<compile_context>
chip_gen: v7x
topology: tpu7x:2x2x1
jax: 0.10.0
libtpu: 0.0.40
codegen_flags: <defaults>
</compile_context>

<pallas_src>
import jax
import jax.numpy as jnp
from jax.experimental import pallas as pl
from jax.experimental.pallas import tpu as pltpu

# CustomRNN default hyperparameters
INPUT_SIZE = 1
HIDDEN_SIZE = 10
N_LAYERS = 1        # single unidirectional layer (dropout is a no-op at n_layers=1)


def rnn_dense_kernel(x_ref, whh_ref, pk_ref, out_ref):
    # x_ref:   (N, L)  batch-first signal, trailing size-1 input dim already squeezed
    # whh_ref: (H, H)  W_hh^T
    # pk_ref:  (4, H)  packed params: row0 = W_ih^T, row1 = b_ih + b_hh,
    #                  row2 = dense1.weight (1 x H), row3 = dense1.bias (replicated)
    # out_ref: (N, L)  dense1 output for every (batch, time)
    N, L = x_ref.shape
    H = whh_ref.shape[0]

    # Hoist loop-invariant weights out of the serial chain.
    whh = whh_ref[...]                      # (H, H)
    pk = pk_ref[...]                        # (4, H)
    wih = pk[0:1, :]                        # (1, H)  W_ih^T (input_size == 1 -> a single row)
    b = pk[1:2, :]                          # (1, H)  b_ih + b_hh
    w1 = pk[2:3, :]                         # (1, H)  dense1 weight row
    b1 = pk[3:4, 0:1]                       # (1, 1)  dense1 bias

    x = x_ref[...]                          # (N, L)
    lane = jax.lax.broadcasted_iota(jnp.int32, (1, L), 1)   # lane index, for one-hot scatter

    h = jnp.zeros((N, H), jnp.float32)
    d = jnp.zeros((N, L), jnp.float32)      # register accumulator for dense1 outputs

    # L is static and small -> fully unrolled so the scheduler sees across iterations.
    for t in range(L):
        # Carry-independent input projection (overlaps with the previous step's MXU work).
        xp_t = x[:, t:t + 1] * wih + b                                   # (N,1)*(1,H)+(1,H) -> (N,H)
        # Only this matmul + add + tanh sits on the serial per-step chain.
        h = jnp.tanh(xp_t + jnp.dot(h, whh, preferred_element_type=jnp.float32))
        # dense1 fused per step: XLU lane reduce + one-hot scatter into column t (off the chain).
        d_t = jnp.sum(h * w1, axis=-1, keepdims=True)                    # (N, 1)
        d = d + jnp.where(lane == t, d_t, jnp.float32(0.0))              # (N, L)

    out_ref[...] = d + b1                   # single (N, L) store


def custom_rnn_forward(signal, params):
    """signal: (N, L, 1) float32 (batch_first, like PyTorch). Returns (N, L, 1)."""
    N, L, D = signal.shape
    assert D == INPUT_SIZE
    x2d = signal.reshape(N, L).astype(jnp.float32)   # drop the size-1 input dim (free, no transpose)

    out2d = pl.pallas_call(
        rnn_dense_kernel,
        out_shape=jax.ShapeDtypeStruct((N, L), jnp.float32),
        in_specs=[pl.BlockSpec(memory_space=pltpu.MemorySpace.VMEM)] * 3,
        out_specs=pl.BlockSpec(memory_space=pltpu.MemorySpace.VMEM),
    )(x2d, params["whh_T"], params["packed"])

    # add back the trailing size-1 dim to match dense1's (N, L, 1) output in PyTorch (free)
    return out2d[:, :, None]


def init_params(key):
    """PyTorch-style U(-1/sqrt(hidden), 1/sqrt(hidden)) init, stored pre-transposed and packed."""
    H, D = HIDDEN_SIZE, INPUT_SIZE
    bound = 1.0 / jnp.sqrt(H)
    keys = jax.random.split(key, 6)

    def u(k, shape):
        return jax.random.uniform(k, shape, jnp.float32, -bound, bound)

    wih_T = u(keys[0], (D, H))                      # W_ih^T : (input, hidden) == (1, H)
    whh_T = u(keys[1], (H, H))                      # W_hh^T
    b = u(keys[2], (1, H)) + u(keys[3], (1, H))     # b_ih + b_hh
    w1_row = u(keys[4], (1, H))                     # dense1.weight, shape (1, H)
    b1 = u(keys[5], (1, 1))                         # dense1.bias

    # Pack all tiny params into a single (4, H) kernel operand (packed once at init, not per call).
    packed = jnp.concatenate([wih_T, b, w1_row, jnp.broadcast_to(b1, (1, H))], axis=0)
    return dict(wih_T=wih_T, whh_T=whh_T, b=b, w1_row=w1_row, b1=b1, packed=packed)


def reference_forward(signal, params):
    """Pure-JAX reference of CustomRNN.forward (RNN-tanh, 1 layer, then Linear(H,1))."""
    N, L, _ = signal.shape
    h = jnp.zeros((N, HIDDEN_SIZE), jnp.float32)
    outs = []
    for t in range(L):
        xt = signal[:, t, :]                                            # (N, 1)
        h = jnp.tanh(xt @ params["wih_T"] + h @ params["whh_T"] + params["b"])
        outs.append(h)
    hs = jnp.stack(outs, axis=1)                                        # (N, L, H)
    return hs @ params["w1_row"].T + params["b1"]                       # (N, L, 1)


if __name__ == "__main__":
    key = jax.random.PRNGKey(0)
    k_x, k_p = jax.random.split(key, 2)

    # Shapes consistent with CustomSignalDataset: sequences of 10 samples, input_size=1.
    N, L = 8, 10
    Fs = 1600.0
    phase = jax.random.uniform(k_x, (N, 1, 1), jnp.float32, 0.0, 1.0 / 40.0)
    t_pts = jnp.linspace(0.0, 10.0 / Fs, L, dtype=jnp.float32)[None, :, None]
    signal = jnp.sin(2.0 * jnp.pi * 40.0 * (phase + t_pts)).astype(jnp.float32)  # (N, L, 1)

    params = init_params(k_p)

    out = custom_rnn_forward(signal, params)
    out = jax.block_until_ready(out)

    ref = reference_forward(signal, params)
    assert out.shape == (N, L, 1)
    assert jnp.allclose(out, ref, atol=1e-4, rtol=1e-4), (out, ref)

    print("KERNEL_OK")
</pallas_src>

<mosaic_0001>
module attributes {stable_mosaic.version = 11 : i64} {
  func.func @rnn_dense_kernel(%arg0: memref<8x10xf32, #tpu.memory_space<vmem>>, %arg1: memref<10x10xf32, #tpu.memory_space<vmem>>, %arg2: memref<4x10xf32, #tpu.memory_space<vmem>>, %arg3: memref<8x10xf32, #tpu.memory_space<vmem>>) attributes {dimension_semantics = [], scalar_prefetch = 0 : i64, scratch_operands = 0 : i64, tpu.core_type = #tpu.core_type<tc>} {
    %c0 = arith.constant 0 : index
    %c0_0 = arith.constant 0 : index
    %0 = vector.load %arg1[%c0, %c0_0] : memref<10x10xf32, #tpu.memory_space<vmem>>, vector<10x10xf32>
    %c0_1 = arith.constant 0 : index
    %c0_2 = arith.constant 0 : index
    %1 = vector.load %arg2[%c0_1, %c0_2] : memref<4x10xf32, #tpu.memory_space<vmem>>, vector<4x10xf32>
    %2 = vector.extract_strided_slice %1 {offsets = [0, 0], sizes = [1, 10], strides = [1, 1]} : vector<4x10xf32> to vector<1x10xf32>
    %3 = vector.extract_strided_slice %1 {offsets = [1, 0], sizes = [1, 10], strides = [1, 1]} : vector<4x10xf32> to vector<1x10xf32>
    %4 = vector.extract_strided_slice %1 {offsets = [2, 0], sizes = [1, 10], strides = [1, 1]} : vector<4x10xf32> to vector<1x10xf32>
    %5 = vector.extract_strided_slice %1 {offsets = [3, 0], sizes = [1, 1], strides = [1, 1]} : vector<4x10xf32> to vector<1x1xf32>
    %c0_3 = arith.constant 0 : index
    %c0_4 = arith.constant 0 : index
    %6 = vector.load %arg0[%c0_3, %c0_4] : memref<8x10xf32, #tpu.memory_space<vmem>>, vector<8x10xf32>
    %7 = tpu.iota {dimensions = array<i32: 1>} : vector<1x10xi32>
    %cst = arith.constant 0.000000e+00 : f32
    %8 = vector.broadcast %cst : f32 to vector<8x10xf32>
    %cst_5 = arith.constant 0.000000e+00 : f32
    %9 = vector.broadcast %cst_5 : f32 to vector<8x10xf32>
    %10 = vector.extract_strided_slice %6 {offsets = [0, 0], sizes = [8, 1], strides = [1, 1]} : vector<8x10xf32> to vector<8x1xf32>
    %11 = vector.broadcast %10 : vector<8x1xf32> to vector<8x10xf32>
    %12 = vector.broadcast %2 : vector<1x10xf32> to vector<8x10xf32>
    %13 = arith.mulf %11, %12 : vector<8x10xf32>
    %14 = vector.broadcast %3 : vector<1x10xf32> to vector<8x10xf32>
    %15 = arith.addf %13, %14 : vector<8x10xf32>
    %cst_6 = arith.constant dense<0.000000e+00> : vector<8x10xf32>
    %16 = tpu.matmul %8, %0, %cst_6 {dimension_numbers = #tpu.dot_dimension_numbers<[1], [0], [0], [1], [0, 0, 1, 1], [], []>} : vector<8x10xf32>, vector<10x10xf32>, vector<8x10xf32> -> vector<8x10xf32>
    %17 = arith.addf %15, %16 : vector<8x10xf32>
    %18 = math.tanh %17 : vector<8x10xf32>
    %19 = vector.broadcast %4 : vector<1x10xf32> to vector<8x10xf32>
    %20 = arith.mulf %18, %19 : vector<8x10xf32>
    %cst_7 = arith.constant dense<0.000000e+00> : vector<8xf32>
    %21 = vector.multi_reduction <add>, %20, %cst_7 [1] : vector<8x10xf32> to vector<8xf32>
    %22 = vector.shape_cast %21 : vector<8xf32> to vector<8x1xf32>
    %c0_i32 = arith.constant 0 : i32
    %23 = vector.broadcast %c0_i32 : i32 to vector<1x10xi32>
    %24 = arith.cmpi eq, %7, %23 : vector<1x10xi32>
    %cst_8 = arith.constant 0.000000e+00 : f32
    %25 = vector.shape_cast %24 : vector<1x10xi1> to vector<1x10xi1>
    %26 = vector.broadcast %25 : vector<1x10xi1> to vector<8x10xi1>
    %27 = vector.shape_cast %22 : vector<8x1xf32> to vector<8x1xf32>
    %28 = vector.broadcast %27 : vector<8x1xf32> to vector<8x10xf32>
    %29 = vector.broadcast %cst_8 : f32 to vector<8x10xf32>
    %30 = arith.select %26, %28, %29 : vector<8x10xi1>, vector<8x10xf32>
    %31 = arith.addf %9, %30 : vector<8x10xf32>
    %32 = vector.extract_strided_slice %6 {offsets = [0, 1], sizes = [8, 1], strides = [1, 1]} : vector<8x10xf32> to vector<8x1xf32>
    %33 = vector.broadcast %32 : vector<8x1xf32> to vector<8x10xf32>
    %34 = vector.broadcast %2 : vector<1x10xf32> to vector<8x10xf32>
    %35 = arith.mulf %33, %34 : vector<8x10xf32>
    %36 = vector.broadcast %3 : vector<1x10xf32> to vector<8x10xf32>
    %37 = arith.addf %35, %36 : vector<8x10xf32>
    %cst_9 = arith.constant dense<0.000000e+00> : vector<8x10xf32>
    %38 = tpu.matmul %18, %0, %cst_9 {dimension_numbers = #tpu.dot_dimension_numbers<[1], [0], [0], [1], [0, 0, 1, 1], [], []>} : vector<8x10xf32>, vector<10x10xf32>, vector<8x10xf32> -> vector<8x10xf32>
    %39 = arith.addf %37, %38 : vector<8x10xf32>
    %40 = math.tanh %39 : vector<8x10xf32>
    %41 = vector.broadcast %4 : vector<1x10xf32> to vector<8x10xf32>
    %42 = arith.mulf %40, %41 : vector<8x10xf32>
    %cst_10 = arith.constant dense<0.000000e+00> : vector<8xf32>
    %43 = vector.multi_reduction <add>, %42, %cst_10 [1] : vector<8x10xf32> to vector<8xf32>
    %44 = vector.shape_cast %43 : vector<8xf32> to vector<8x1xf32>
    %c1_i32 = arith.constant 1 : i32
    %45 = vector.broadcast %c1_i32 : i32 to vector<1x10xi32>
    %46 = arith.cmpi eq, %7, %45 : vector<1x10xi32>
    %cst_11 = arith.constant 0.000000e+00 : f32
    %47 = vector.shape_cast %46 : vector<1x10xi1> to vector<1x10xi1>
    %48 = vector.broadcast %47 : vector<1x10xi1> to vector<8x10xi1>
    %49 = vector.shape_cast %44 : vector<8x1xf32> to vector<8x1xf32>
    %50 = vector.broadcast %49 : vector<8x1xf32> to vector<8x10xf32>
    %51 = vector.broadcast %cst_11 : f32 to vector<8x10xf32>
    %52 = arith.select %48, %50, %51 : vector<8x10xi1>, vector<8x10xf32>
    %53 = arith.addf %31, %52 : vector<8x10xf32>
    %54 = vector.extract_strided_slice %6 {offsets = [0, 2], sizes = [8, 1], strides = [1, 1]} : vector<8x10xf32> to vector<8x1xf32>
    %55 = vector.broadcast %54 : vector<8x1xf32> to vector<8x10xf32>
    %56 = vector.broadcast %2 : vector<1x10xf32> to vector<8x10xf32>
    %57 = arith.mulf %55, %56 : vector<8x10xf32>
    %58 = vector.broadcast %3 : vector<1x10xf32> to vector<8x10xf32>
    %59 = arith.addf %57, %58 : vector<8x10xf32>
    %cst_12 = arith.constant dense<0.000000e+00> : vector<8x10xf32>
    %60 = tpu.matmul %40, %0, %cst_12 {dimension_numbers = #tpu.dot_dimension_numbers<[1], [0], [0], [1], [0, 0, 1, 1], [], []>} : vector<8x10xf32>, vector<10x10xf32>, vector<8x10xf32> -> vector<8x10xf32>
    %61 = arith.addf %59, %60 : vector<8x10xf32>
    %62 = math.tanh %61 : vector<8x10xf32>
    %63 = vector.broadcast %4 : vector<1x10xf32> to vector<8x10xf32>
    %64 = arith.mulf %62, %63 : vector<8x10xf32>
    %cst_13 = arith.constant dense<0.000000e+00> : vector<8xf32>
    %65 = vector.multi_reduction <add>, %64, %cst_13 [1] : vector<8x10xf32> to vector<8xf32>
    %66 = vector.shape_cast %65 : vector<8xf32> to vector<8x1xf32>
    %c2_i32 = arith.constant 2 : i32
    %67 = vector.broadcast %c2_i32 : i32 to vector<1x10xi32>
    %68 = arith.cmpi eq, %7, %67 : vector<1x10xi32>
    %cst_14 = arith.constant 0.000000e+00 : f32
    %69 = vector.shape_cast %68 : vector<1x10xi1> to vector<1x10xi1>
    %70 = vector.broadcast %69 : vector<1x10xi1> to vector<8x10xi1>
    %71 = vector.shape_cast %66 : vector<8x1xf32> to vector<8x1xf32>
    %72 = vector.broadcast %71 : vector<8x1xf32> to vector<8x10xf32>
    %73 = vector.broadcast %cst_14 : f32 to vector<8x10xf32>
    %74 = arith.select %70, %72, %73 : vector<8x10xi1>, vector<8x10xf32>
    %75 = arith.addf %53, %74 : vector<8x10xf32>
    %76 = vector.extract_strided_slice %6 {offsets = [0, 3], sizes = [8, 1], strides = [1, 1]} : vector<8x10xf32> to vector<8x1xf32>
    %77 = vector.broadcast %76 : vector<8x1xf32> to vector<8x10xf32>
    %78 = vector.broadcast %2 : vector<1x10xf32> to vector<8x10xf32>
    %79 = arith.mulf %77, %78 : vector<8x10xf32>
    %80 = vector.broadcast %3 : vector<1x10xf32> to vector<8x10xf32>
    %81 = arith.addf %79, %80 : vector<8x10xf32>
    %cst_15 = arith.constant dense<0.000000e+00> : vector<8x10xf32>
    %82 = tpu.matmul %62, %0, %cst_15 {dimension_numbers = #tpu.dot_dimension_numbers<[1], [0], [0], [1], [0, 0, 1, 1], [], []>} : vector<8x10xf32>, vector<10x10xf32>, vector<8x10xf32> -> vector<8x10xf32>
    %83 = arith.addf %81, %82 : vector<8x10xf32>
    %84 = math.tanh %83 : vector<8x10xf32>
    %85 = vector.broadcast %4 : vector<1x10xf32> to vector<8x10xf32>
    %86 = arith.mulf %84, %85 : vector<8x10xf32>
    %cst_16 = arith.constant dense<0.000000e+00> : vector<8xf32>
    %87 = vector.multi_reduction <add>, %86, %cst_16 [1] : vector<8x10xf32> to vector<8xf32>
    %88 = vector.shape_cast %87 : vector<8xf32> to vector<8x1xf32>
    %c3_i32 = arith.constant 3 : i32
    %89 = vector.broadcast %c3_i32 : i32 to vector<1x10xi32>
    %90 = arith.cmpi eq, %7, %89 : vector<1x10xi32>
    %cst_17 = arith.constant 0.000000e+00 : f32
    %91 = vector.shape_cast %90 : vector<1x10xi1> to vector<1x10xi1>
    %92 = vector.broadcast %91 : vector<1x10xi1> to vector<8x10xi1>
    %93 = vector.shape_cast %88 : vector<8x1xf32> to vector<8x1xf32>
    %94 = vector.broadcast %93 : vector<8x1xf32> to vector<8x10xf32>
    %95 = vector.broadcast %cst_17 : f32 to vector<8x10xf32>
    %96 = arith.select %92, %94, %95 : vector<8x10xi1>, vector<8x10xf32>
    %97 = arith.addf %75, %96 : vector<8x10xf32>
    %98 = vector.extract_strided_slice %6 {offsets = [0, 4], sizes = [8, 1], strides = [1, 1]} : vector<8x10xf32> to vector<8x1xf32>
    %99 = vector.broadcast %98 : vector<8x1xf32> to vector<8x10xf32>
    %100 = vector.broadcast %2 : vector<1x10xf32> to vector<8x10xf32>
    %101 = arith.mulf %99, %100 : vector<8x10xf32>
    %102 = vector.broadcast %3 : vector<1x10xf32> to vector<8x10xf32>
    %103 = arith.addf %101, %102 : vector<8x10xf32>
    %cst_18 = arith.constant dense<0.000000e+00> : vector<8x10xf32>
    %104 = tpu.matmul %84, %0, %cst_18 {dimension_numbers = #tpu.dot_dimension_numbers<[1], [0], [0], [1], [0, 0, 1, 1], [], []>} : vector<8x10xf32>, vector<10x10xf32>, vector<8x10xf32> -> vector<8x10xf32>
    %105 = arith.addf %103, %104 : vector<8x10xf32>
    %106 = math.tanh %105 : vector<8x10xf32>
    %107 = vector.broadcast %4 : vector<1x10xf32> to vector<8x10xf32>
    %108 = arith.mulf %106, %107 : vector<8x10xf32>
    %cst_19 = arith.constant dense<0.000000e+00> : vector<8xf32>
    %109 = vector.multi_reduction <add>, %108, %cst_19 [1] : vector<8x10xf32> to vector<8xf32>
    %110 = vector.shape_cast %109 : vector<8xf32> to vector<8x1xf32>
    %c4_i32 = arith.constant 4 : i32
    %111 = vector.broadcast %c4_i32 : i32 to vector<1x10xi32>
    %112 = arith.cmpi eq, %7, %111 : vector<1x10xi32>
    %cst_20 = arith.constant 0.000000e+00 : f32
    %113 = vector.shape_cast %112 : vector<1x10xi1> to vector<1x10xi1>
    %114 = vector.broadcast %113 : vector<1x10xi1> to vector<8x10xi1>
    %115 = vector.shape_cast %110 : vector<8x1xf32> to vector<8x1xf32>
    %116 = vector.broadcast %115 : vector<8x1xf32> to vector<8x10xf32>
    %117 = vector.broadcast %cst_20 : f32 to vector<8x10xf32>
    %118 = arith.select %114, %116, %117 : vector<8x10xi1>, vector<8x10xf32>
    %119 = arith.addf %97, %118 : vector<8x10xf32>
    %120 = vector.extract_strided_slice %6 {offsets = [0, 5], sizes = [8, 1], strides = [1, 1]} : vector<8x10xf32> to vector<8x1xf32>
    %121 = vector.broadcast %120 : vector<8x1xf32> to vector<8x10xf32>
    %122 = vector.broadcast %2 : vector<1x10xf32> to vector<8x10xf32>
    %123 = arith.mulf %121, %122 : vector<8x10xf32>
    %124 = vector.broadcast %3 : vector<1x10xf32> to vector<8x10xf32>
    %125 = arith.addf %123, %124 : vector<8x10xf32>
    %cst_21 = arith.constant dense<0.000000e+00> : vector<8x10xf32>
    %126 = tpu.matmul %106, %0, %cst_21 {dimension_numbers = #tpu.dot_dimension_numbers<[1], [0], [0], [1], [0, 0, 1, 1], [], []>} : vector<8x10xf32>, vector<10x10xf32>, vector<8x10xf32> -> vector<8x10xf32>
    %127 = arith.addf %125, %126 : vector<8x10xf32>
    %128 = math.tanh %127 : vector<8x10xf32>
    %129 = vector.broadcast %4 : vector<1x10xf32> to vector<8x10xf32>
    %130 = arith.mulf %128, %129 : vector<8x10xf32>
    %cst_22 = arith.constant dense<0.000000e+00> : vector<8xf32>
    %131 = vector.multi_reduction <add>, %130, %cst_22 [1] : vector<8x10xf32> to vector<8xf32>
    %132 = vector.shape_cast %131 : vector<8xf32> to vector<8x1xf32>
    %c5_i32 = arith.constant 5 : i32
    %133 = vector.broadcast %c5_i32 : i32 to vector<1x10xi32>
    %134 = arith.cmpi eq, %7, %133 : vector<1x10xi32>
    %cst_23 = arith.constant 0.000000e+00 : f32
    %135 = vector.shape_cast %134 : vector<1x10xi1> to vector<1x10xi1>
    %136 = vector.broadcast %135 : vector<1x10xi1> to vector<8x10xi1>
    %137 = vector.shape_cast %132 : vector<8x1xf32> to vector<8x1xf32>
    %138 = vector.broadcast %137 : vector<8x1xf32> to vector<8x10xf32>
    %139 = vector.broadcast %cst_23 : f32 to vector<8x10xf32>
    %140 = arith.select %136, %138, %139 : vector<8x10xi1>, vector<8x10xf32>
    %141 = arith.addf %119, %140 : vector<8x10xf32>
    %142 = vector.extract_strided_slice %6 {offsets = [0, 6], sizes = [8, 1], strides = [1, 1]} : vector<8x10xf32> to vector<8x1xf32>
    %143 = vector.broadcast %142 : vector<8x1xf32> to vector<8x10xf32>
    %144 = vector.broadcast %2 : vector<1x10xf32> to vector<8x10xf32>
    %145 = arith.mulf %143, %144 : vector<8x10xf32>
    %146 = vector.broadcast %3 : vector<1x10xf32> to vector<8x10xf32>
    %147 = arith.addf %145, %146 : vector<8x10xf32>
    %cst_24 = arith.constant dense<0.000000e+00> : vector<8x10xf32>
    %148 = tpu.matmul %128, %0, %cst_24 {dimension_numbers = #tpu.dot_dimension_numbers<[1], [0], [0], [1], [0, 0, 1, 1], [], []>} : vector<8x10xf32>, vector<10x10xf32>, vector<8x10xf32> -> vector<8x10xf32>
    %149 = arith.addf %147, %148 : vector<8x10xf32>
    %150 = math.tanh %149 : vector<8x10xf32>
    %151 = vector.broadcast %4 : vector<1x10xf32> to vector<8x10xf32>
    %152 = arith.mulf %150, %151 : vector<8x10xf32>
    %cst_25 = arith.constant dense<0.000000e+00> : vector<8xf32>
    %153 = vector.multi_reduction <add>, %152, %cst_25 [1] : vector<8x10xf32> to vector<8xf32>
    %154 = vector.shape_cast %153 : vector<8xf32> to vector<8x1xf32>
    %c6_i32 = arith.constant 6 : i32
    %155 = vector.broadcast %c6_i32 : i32 to vector<1x10xi32>
    %156 = arith.cmpi eq, %7, %155 : vector<1x10xi32>
    %cst_26 = arith.constant 0.000000e+00 : f32
    %157 = vector.shape_cast %156 : vector<1x10xi1> to vector<1x10xi1>
    %158 = vector.broadcast %157 : vector<1x10xi1> to vector<8x10xi1>
    %159 = vector.shape_cast %154 : vector<8x1xf32> to vector<8x1xf32>
    %160 = vector.broadcast %159 : vector<8x1xf32> to vector<8x10xf32>
    %161 = vector.broadcast %cst_26 : f32 to vector<8x10xf32>
    %162 = arith.select %158, %160, %161 : vector<8x10xi1>, vector<8x10xf32>
    %163 = arith.addf %141, %162 : vector<8x10xf32>
    %164 = vector.extract_strided_slice %6 {offsets = [0, 7], sizes = [8, 1], strides = [1, 1]} : vector<8x10xf32> to vector<8x1xf32>
    %165 = vector.broadcast %164 : vector<8x1xf32> to vector<8x10xf32>
    %166 = vector.broadcast %2 : vector<1x10xf32> to vector<8x10xf32>
    %167 = arith.mulf %165, %166 : vector<8x10xf32>
    %168 = vector.broadcast %3 : vector<1x10xf32> to vector<8x10xf32>
    %169 = arith.addf %167, %168 : vector<8x10xf32>
    %cst_27 = arith.constant dense<0.000000e+00> : vector<8x10xf32>
    %170 = tpu.matmul %150, %0, %cst_27 {dimension_numbers = #tpu.dot_dimension_numbers<[1], [0], [0], [1], [0, 0, 1, 1], [], []>} : vector<8x10xf32>, vector<10x10xf32>, vector<8x10xf32> -> vector<8x10xf32>
    %171 = arith.addf %169, %170 : vector<8x10xf32>
    %172 = math.tanh %171 : vector<8x10xf32>
    %173 = vector.broadcast %4 : vector<1x10xf32> to vector<8x10xf32>
    %174 = arith.mulf %172, %173 : vector<8x10xf32>
    %cst_28 = arith.constant dense<0.000000e+00> : vector<8xf32>
    %175 = vector.multi_reduction <add>, %174, %cst_28 [1] : vector<8x10xf32> to vector<8xf32>
    %176 = vector.shape_cast %175 : vector<8xf32> to vector<8x1xf32>
    %c7_i32 = arith.constant 7 : i32
    %177 = vector.broadcast %c7_i32 : i32 to vector<1x10xi32>
    %178 = arith.cmpi eq, %7, %177 : vector<1x10xi32>
    %cst_29 = arith.constant 0.000000e+00 : f32
    %179 = vector.shape_cast %178 : vector<1x10xi1> to vector<1x10xi1>
    %180 = vector.broadcast %179 : vector<1x10xi1> to vector<8x10xi1>
    %181 = vector.shape_cast %176 : vector<8x1xf32> to vector<8x1xf32>
    %182 = vector.broadcast %181 : vector<8x1xf32> to vector<8x10xf32>
    %183 = vector.broadcast %cst_29 : f32 to vector<8x10xf32>
    %184 = arith.select %180, %182, %183 : vector<8x10xi1>, vector<8x10xf32>
    %185 = arith.addf %163, %184 : vector<8x10xf32>
    %186 = vector.extract_strided_slice %6 {offsets = [0, 8], sizes = [8, 1], strides = [1, 1]} : vector<8x10xf32> to vector<8x1xf32>
    %187 = vector.broadcast %186 : vector<8x1xf32> to vector<8x10xf32>
    %188 = vector.broadcast %2 : vector<1x10xf32> to vector<8x10xf32>
    %189 = arith.mulf %187, %188 : vector<8x10xf32>
    %190 = vector.broadcast %3 : vector<1x10xf32> to vector<8x10xf32>
    %191 = arith.addf %189, %190 : vector<8x10xf32>
    %cst_30 = arith.constant dense<0.000000e+00> : vector<8x10xf32>
    %192 = tpu.matmul %172, %0, %cst_30 {dimension_numbers = #tpu.dot_dimension_numbers<[1], [0], [0], [1], [0, 0, 1, 1], [], []>} : vector<8x10xf32>, vector<10x10xf32>, vector<8x10xf32> -> vector<8x10xf32>
    %193 = arith.addf %191, %192 : vector<8x10xf32>
    %194 = math.tanh %193 : vector<8x10xf32>
    %195 = vector.broadcast %4 : vector<1x10xf32> to vector<8x10xf32>
    %196 = arith.mulf %194, %195 : vector<8x10xf32>
    %cst_31 = arith.constant dense<0.000000e+00> : vector<8xf32>
    %197 = vector.multi_reduction <add>, %196, %cst_31 [1] : vector<8x10xf32> to vector<8xf32>
    %198 = vector.shape_cast %197 : vector<8xf32> to vector<8x1xf32>
    %c8_i32 = arith.constant 8 : i32
    %199 = vector.broadcast %c8_i32 : i32 to vector<1x10xi32>
    %200 = arith.cmpi eq, %7, %199 : vector<1x10xi32>
    %cst_32 = arith.constant 0.000000e+00 : f32
    %201 = vector.shape_cast %200 : vector<1x10xi1> to vector<1x10xi1>
    %202 = vector.broadcast %201 : vector<1x10xi1> to vector<8x10xi1>
    %203 = vector.shape_cast %198 : vector<8x1xf32> to vector<8x1xf32>
    %204 = vector.broadcast %203 : vector<8x1xf32> to vector<8x10xf32>
    %205 = vector.broadcast %cst_32 : f32 to vector<8x10xf32>
    %206 = arith.select %202, %204, %205 : vector<8x10xi1>, vector<8x10xf32>
    %207 = arith.addf %185, %206 : vector<8x10xf32>
    %208 = vector.extract_strided_slice %6 {offsets = [0, 9], sizes = [8, 1], strides = [1, 1]} : vector<8x10xf32> to vector<8x1xf32>
    %209 = vector.broadcast %208 : vector<8x1xf32> to vector<8x10xf32>
    %210 = vector.broadcast %2 : vector<1x10xf32> to vector<8x10xf32>
    %211 = arith.mulf %209, %210 : vector<8x10xf32>
    %212 = vector.broadcast %3 : vector<1x10xf32> to vector<8x10xf32>
    %213 = arith.addf %211, %212 : vector<8x10xf32>
    %cst_33 = arith.constant dense<0.000000e+00> : vector<8x10xf32>
    %214 = tpu.matmul %194, %0, %cst_33 {dimension_numbers = #tpu.dot_dimension_numbers<[1], [0], [0], [1], [0, 0, 1, 1], [], []>} : vector<8x10xf32>, vector<10x10xf32>, vector<8x10xf32> -> vector<8x10xf32>
    %215 = arith.addf %213, %214 : vector<8x10xf32>
    %216 = math.tanh %215 : vector<8x10xf32>
    %217 = vector.broadcast %4 : vector<1x10xf32> to vector<8x10xf32>
    %218 = arith.mulf %216, %217 : vector<8x10xf32>
    %cst_34 = arith.constant dense<0.000000e+00> : vector<8xf32>
    %219 = vector.multi_reduction <add>, %218, %cst_34 [1] : vector<8x10xf32> to vector<8xf32>
    %220 = vector.shape_cast %219 : vector<8xf32> to vector<8x1xf32>
    %c9_i32 = arith.constant 9 : i32
    %221 = vector.broadcast %c9_i32 : i32 to vector<1x10xi32>
    %222 = arith.cmpi eq, %7, %221 : vector<1x10xi32>
    %cst_35 = arith.constant 0.000000e+00 : f32
    %223 = vector.shape_cast %222 : vector<1x10xi1> to vector<1x10xi1>
    %224 = vector.broadcast %223 : vector<1x10xi1> to vector<8x10xi1>
    %225 = vector.shape_cast %220 : vector<8x1xf32> to vector<8x1xf32>
    %226 = vector.broadcast %225 : vector<8x1xf32> to vector<8x10xf32>
    %227 = vector.broadcast %cst_35 : f32 to vector<8x10xf32>
    %228 = arith.select %224, %226, %227 : vector<8x10xi1>, vector<8x10xf32>
    %229 = arith.addf %207, %228 : vector<8x10xf32>
    %230 = vector.broadcast %5 : vector<1x1xf32> to vector<8x10xf32>
    %231 = arith.addf %229, %230 : vector<8x10xf32>
    %c0_36 = arith.constant 0 : index
    %c0_37 = arith.constant 0 : index
    %232 = vector.load %arg3[%c0_36, %c0_37] : memref<8x10xf32, #tpu.memory_space<vmem>>, vector<8x10xf32>
    tpu.vector_store %arg3[%c0_36, %c0_37], %231 {strides = array<i32>} : memref<8x10xf32, #tpu.memory_space<vmem>>, vector<8x10xf32>,
    return
  }
}

</mosaic_0001>

<llo_original>
// kernel: tpu_custom_call.1
$region0: #{tpu_custom_call.1}
  #allocation0 [shape = 'u32[]', space=smem, size = 0x4, offset = 0x4, fixed_abs, tag = 'smem constant byte address 0x4 - core index']
  #allocation1 [shape = 'u32[144,128]{1,0:T(1,128)}', space=vmem, size = 0x12000, scoped, tag = 'internal scratch']
  %s0 = inlined_call_operand.hbm [shape: f32[8,10], index: 0, kind: input, shape index: {}]
  %s1 = inlined_call_operand.hbm [shape: f32[10,10], index: 1, kind: input, shape index: {}]
  %s2 = inlined_call_operand.vmem [shape: f32[4,10], index: 2, kind: input, shape index: {}]
  %s3 = inlined_call_operand.hbm [shape: f32[8,10], index: 3, kind: output, shape index: {}]
  %s4 = sld [smem:[#allocation0]]
  $region30: #{tpu_custom_call.1} parent=0
    _
  %s6 = ssub.s32 1, %s4
  %s7 = scalar_select 0, %s6, %s4
  $region1: #{tpu_custom_call.1} parent=0
    #allocation2 [shape = 'u8[4096]{0}', space=vmem, size = 0x1000, scoped, tag = 'input window, operand 0, single buffered']
    #allocation3 [shape = 's32[1]{0}', space=sflag, size = 0x4, scoped, tag = 'scoped memory for tpu_custom_call.1']
    #allocation4 [shape = 's32[1]{0}', space=sflag, size = 0x4, scoped, tag = 'scoped memory for tpu_custom_call.1']
    #allocation5 [shape = 'u8[8192]{0}', space=vmem, size = 0x2000, scoped, tag = 'input window, operand 1, single buffered']
    #allocation6 [shape = 's32[1]{0}', space=sflag, size = 0x4, scoped, tag = 'scoped memory for tpu_custom_call.1']
    #allocation7 [shape = 'u8[4096]{0}', space=vmem, size = 0x1000, scoped, tag = 'output window, operand 0, single buffered']
    %8 = vsyncpa [#allocation3], 0
    %9 = vsyncpa [#allocation6], 0
    %10 = vsyncpa [#allocation4], 0
    // Predicated region
    $region2: #{tpu_custom_call.1} parent=1 // pred_check
      _
    $region3: #{tpu_custom_call.1} parent=1 // pred_check_branch
      %12 = sbr.rel (0) target = $region5
    $region4: #{tpu_custom_call.1} parent=1 // pred_region
      %s14 = ssub.s32 128, 128
      %15 = vsyncadd [#allocation3], %s14
      %s17 = sshll.u32 [#allocation2], 4
      %s18 = int_to_ptr.vmem [resolvable:$true] %s17
      %20 = dma.hbm_to_vmem [thread:$0]  %s0, 128, %s18, [#allocation3]
    $region5: #{tpu_custom_call.1} parent=1 // pred_fallthru
      _
    // Predicated region
    $region6: #{tpu_custom_call.1} parent=1 // pred_check
      _
    $region7: #{tpu_custom_call.1} parent=1 // pred_check_branch
      %22 = sbr.rel (0) target = $region9
    $region8: #{tpu_custom_call.1} parent=1 // pred_region
      %s24 = ssub.s32 256, 256
      %25 = vsyncadd [#allocation6], %s24
      %s26 = sshll.u32 [#allocation5], 4
      %s27 = int_to_ptr.vmem [resolvable:$true] %s26
      %32 = dma.hbm_to_vmem [thread:$0]  %s1, 256, %s27, [#allocation6], 128, 128, 8
    $region9: #{tpu_custom_call.1} parent=1 // pred_fallthru
      _
    // Predicated region
    $region10: #{tpu_custom_call.1} parent=1 // pred_check
      _
    $region11: #{tpu_custom_call.1} parent=1 // pred_check_branch
      %34 = sbr.rel (0) target = $region13
    $region12: #{tpu_custom_call.1} parent=1 // pred_region
      _
    $region13: #{tpu_custom_call.1} parent=1 // pred_fallthru
      _
    // Predicated region
    $region14: #{tpu_custom_call.1} parent=1 // pred_check
      _
    $region15: #{tpu_custom_call.1} parent=1 // pred_check_branch
      %36 = sbr.rel (0) target = $region17
    $region16: #{tpu_custom_call.1} parent=1 // pred_region
      %37 = dma.done [#allocation3], 128
    $region17: #{tpu_custom_call.1} parent=1 // pred_fallthru
      _
    // Predicated region
    $region18: #{tpu_custom_call.1} parent=1 // pred_check
      _
    $region19: #{tpu_custom_call.1} parent=1 // pred_check_branch
      %39 = sbr.rel (0) target = $region21
    $region20: #{tpu_custom_call.1} parent=1 // pred_region
      %40 = dma.done [#allocation6], 256
    $region21: #{tpu_custom_call.1} parent=1 // pred_fallthru
      _
    %v41 = vld [vmem:[#allocation5] sm:$0xff]
    %v42 = vld [vmem:[#allocation5 + $0x8] sm:$0x3]
    %v43 = vld [vmem:[%s2] sm:$0xf]
    %v44 = vld [vmem:[#allocation2] sm:$0xff]
    %v45 = vlaneseq
    %v46 = vand.u32 %v45, 127
    %48 = vset.pattern.permute.xlu0 0
    %49 = vperm.xlu0 %48, %v44
    %v50 = vpop.permute.xlu0 %49
    %v52 = vlaneseq
    %v53 = vshrl.u32 %v52, 7
    %v54 = vsub.s32 0, %v53
    %v55 = vrot.slane %v43, %v54
    %v56 = vmul.f32 %v50, %v55
    %v57 = vlaneseq
    %v58 = vshrl.u32 %v57, 7
    %v59 = vsub.s32 1, %v58
    %v60 = vrot.slane %v43, %v59
    %v61 = vadd.f32 %v56, %v60
    %vm62 = vcmask 80896
    %v64 = vsel %vm62, 0.0, 0
    %vm66 = vcmask 1041408
    %v68 = vsel %vm66, %v42, 0
    %70 = vmatprep.subr.mxu0 0.0
    %71 = vmatpush1.msra.mxu0 %v41
    %72 = vmatprep.subr.mxu0 0.0
    %73 = vmatpush1.msra.mxu0 %v68
    %74 = vmatprep.subr.mxu0 0.0
    %75 = vmatpush1.msra.mxu0 0.0
    %76 = vmatprep.subr.mxu0 0.0
    %77 = vmatpush1.msra.mxu0 0.0
    %78 = vmatprep.subr.mxu0 0.0
    %79 = vmatpush1.msra.mxu0 0.0
    %80 = vmatprep.subr.mxu0 0.0
    %81 = vmatpush1.msra.mxu0 0.0
    %82 = vmatprep.subr.mxu0 0.0
    %83 = vmatpush1.msra.mxu0 0.0
    %84 = vmatprep.subr.mxu0 0.0
    %85 = vmatpush1.msra.mxu0 0.0
    %86 = vmatprep.subr.mxu0 0.0
    %87 = vmatpush1.msra.mxu0 0.0
    %88 = vmatprep.subr.mxu0 0.0
    %89 = vmatpush1.msra.mxu0 0.0
    %90 = vmatprep.subr.mxu0 0.0
    %91 = vmatpush1.msra.mxu0 0.0
    %92 = vmatprep.subr.mxu0 0.0
    %93 = vmatpush1.msra.mxu0 0.0
    %94 = vmatprep.subr.mxu0 0.0
    %95 = vmatpush1.msra.mxu0 0.0
    %96 = vmatprep.subr.mxu0 0.0
    %97 = vmatpush1.msra.mxu0 0.0
    %98 = vmatprep.subr.mxu0 0.0
    %99 = vmatpush1.msra.mxu0 0.0
    %100 = vmatprep.subr.mxu0 0.0
    %101 = vmatpush1.msra.mxu0 0.0
    %102 = vmatprep.subr.mxu0 0.0
    %103 = vmatpush1.msra.mxu0 0.0
    %104 = vmatprep.subr.mxu0 0.0
    %105 = vmatpush1.msra.mxu0 0.0
    %106 = vmatprep.subr.mxu0 0.0
    %107 = vmatpush1.msra.mxu0 0.0
    %108 = vmatprep.subr.mxu0 0.0
    %109 = vmatpush1.msra.mxu0 0.0
    %110 = vmatprep.subr.mxu0 0.0
    %111 = vmatpush1.msra.mxu0 0.0
    %112 = vmatprep.subr.mxu0 0.0
    %113 = vmatpush1.msra.mxu0 0.0
    %114 = vmatprep.subr.mxu0 0.0
    %115 = vmatpush1.msra.mxu0 0.0
    %116 = vmatprep.subr.mxu0 0.0
    %117 = vmatpush1.msra.mxu0 0.0
    %118 = vmatprep.subr.mxu0 0.0
    %119 = vmatpush1.msra.mxu0 0.0
    %120 = vmatprep.subr.mxu0 0.0
    %121 = vmatpush1.msra.mxu0 0.0
    %122 = vmatprep.subr.mxu0 0.0
    %123 = vmatpush1.msra.mxu0 0.0
    %124 = vmatprep.subr.mxu0 0.0
    %125 = vmatpush1.msra.mxu0 0.0
    %126 = vmatprep.subr.mxu0 0.0
    %127 = vmatpush1.msra.mxu0 0.0
    %128 = vmatprep.subr.mxu0 0.0
    %129 = vmatpush1.msra.mxu0 0.0
    %130 = vmatprep.subr.mxu0 0.0
    %131 = vmatpush1.msra.mxu0 0.0
    %132 = vmatprep.subr.mxu0 0.0
    %133 = vmatpush1.msra.mxu0 0.0
    %134 = vmatprep.mubr.f32.mxu0 0.0
    %135 = vmatmul.mubr.f32.gmra.mrb[0].mxu0 %v64
    %v136 = vpop.f32.mrb[0].mxu0
    %v137 = vadd.f32 0.0, %v136
    %v138 = vpop.f32.mrb[0].mxu0
    %139 = vdwg.mxu0
    %v140 = vadd.f32 %v61, %v137
    %v141 = vtanh.pop %v140
    %v142 = vlaneseq
    %v143 = vshrl.u32 %v142, 7
    %v144 = vsub.s32 2, %v143
    %v145 = vrot.slane %v43, %v144
    %v146 = vmul.f32 %v141, %v145
    %v147 = vsel %vm62, %v146, 0.0
    %148 = vadd.xlane.f32.xlu0 %v147
    %v149 = vpop.xlane.xlu0 %148
    %vm150 = vcmp.eq.s32.totalorder %v46, 0
    %v151 = vsel %vm150, 1, 0
    %vm152 = vcmp.eq.s32.totalorder %v151, 1
    %v153 = vsel %vm152, %v149, 0.0
    %v154 = vadd.f32 %v153, 0.0
    %155 = vset.pattern.permute.xlu0 1
    %156 = vperm.xlu0 %155, %v44
    %v157 = vpop.permute.xlu0 %156
    %v159 = vmul.f32 %v157, %v55
    %v160 = vadd.f32 %v159, %v60
    %v162 = vsel %vm62, %v141, 0
    %164 = vmatprep.subr.mxu0 0.0
    %165 = vmatpush1.msra.mxu0 %v41
    %166 = vmatprep.subr.mxu0 0.0
    %167 = vmatpush1.msra.mxu0 %v68
    %168 = vmatprep.subr.mxu0 0.0
    %169 = vmatpush1.msra.mxu0 0.0
    %170 = vmatprep.subr.mxu0 0.0
    %171 = vmatpush1.msra.mxu0 0.0
    %172 = vmatprep.subr.mxu0 0.0
    %173 = vmatpush1.msra.mxu0 0.0
    %174 = vmatprep.subr.mxu0 0.0
    %175 = vmatpush1.msra.mxu0 0.0
    %176 = vmatprep.subr.mxu0 0.0
    %177 = vmatpush1.msra.mxu0 0.0
    %178 = vmatprep.subr.mxu0 0.0
    %179 = vmatpush1.msra.mxu0 0.0
    %180 = vmatprep.subr.mxu0 0.0
    %181 = vmatpush1.msra.mxu0 0.0
    %182 = vmatprep.subr.mxu0 0.0
    %183 = vmatpush1.msra.mxu0 0.0
    %184 = vmatprep.subr.mxu0 0.0
    %185 = vmatpush1.msra.mxu0 0.0
    %186 = vmatprep.subr.mxu0 0.0
    %187 = vmatpush1.msra.mxu0 0.0
    %188 = vmatprep.subr.mxu0 0.0
    %189 = vmatpush1.msra.mxu0 0.0
    %190 = vmatprep.subr.mxu0 0.0
    %191 = vmatpush1.msra.mxu0 0.0
    %192 = vmatprep.subr.mxu0 0.0
    %193 = vmatpush1.msra.mxu0 0.0
    %194 = vmatprep.subr.mxu0 0.0
    %195 = vmatpush1.msra.mxu0 0.0
    %196 = vmatprep.subr.mxu0 0.0
    %197 = vmatpush1.msra.mxu0 0.0
    %198 = vmatprep.subr.mxu0 0.0
    %199 = vmatpush1.msra.mxu0 0.0
    %200 = vmatprep.subr.mxu0 0.0
    %201 = vmatpush1.msra.mxu0 0.0
    %202 = vmatprep.subr.mxu0 0.0
    %203 = vmatpush1.msra.mxu0 0.0
    %204 = vmatprep.subr.mxu0 0.0
    %205 = vmatpush1.msra.mxu0 0.0
    %206 = vmatprep.subr.mxu0 0.0
    %207 = vmatpush1.msra.mxu0 0.0
    %208 = vmatprep.subr.mxu0 0.0
    %209 = vmatpush1.msra.mxu0 0.0
    %210 = vmatprep.subr.mxu0 0.0
    %211 = vmatpush1.msra.mxu0 0.0
    %212 = vmatprep.subr.mxu0 0.0
    %213 = vmatpush1.msra.mxu0 0.0
    %214 = vmatprep.subr.mxu0 0.0
    %215 = vmatpush1.msra.mxu0 0.0
    %216 = vmatprep.subr.mxu0 0.0
    %217 = vmatpush1.msra.mxu0 0.0
    %218 = vmatprep.subr.mxu0 0.0
    %219 = vmatpush1.msra.mxu0 0.0
    %220 = vmatprep.subr.mxu0 0.0
    %221 = vmatpush1.msra.mxu0 0.0
    %222 = vmatprep.subr.mxu0 0.0
    %223 = vmatpush1.msra.mxu0 0.0
    %224 = vmatprep.subr.mxu0 0.0
    %225 = vmatpush1.msra.mxu0 0.0
    %226 = vmatprep.subr.mxu0 0.0
    %227 = vmatpush1.msra.mxu0 0.0
    %228 = vmatprep.mubr.f32.mxu0 0.0
    %229 = vmatmul.mubr.f32.gmra.mrb[0].mxu0 %v162
    %v230 = vpop.f32.mrb[0].mxu0
    %v231 = vadd.f32 0.0, %v230
    %v232 = vpop.f32.mrb[0].mxu0
    %233 = vdwg.mxu0
    %v234 = vadd.f32 %v160, %v231
    %v235 = vtanh.pop %v234
    %v236 = vmul.f32 %v235, %v145
    %v237 = vsel %vm62, %v236, 0.0
    %238 = vadd.xlane.f32.xlu0 %v237
    %v239 = vpop.xlane.xlu0 %238
    %vm240 = vcmp.eq.s32.totalorder %v46, 1
    %v241 = vsel %vm240, 1, 0
    %vm242 = vcmp.eq.s32.totalorder %v241, 1
    %v243 = vsel %vm242, %v239, 0.0
    %v244 = vadd.f32 %v154, %v243
    %245 = vset.pattern.permute.xlu0 2
    %246 = vperm.xlu0 %245, %v44
    %v247 = vpop.permute.xlu0 %246
    %v249 = vmul.f32 %v247, %v55
    %v250 = vadd.f32 %v249, %v60
    %v252 = vsel %vm62, %v235, 0
    %254 = vmatprep.subr.mxu0 0.0
    %255 = vmatpush1.msra.mxu0 %v41
    %256 = vmatprep.subr.mxu0 0.0
    %257 = vmatpush1.msra.mxu0 %v68
    %258 = vmatprep.subr.mxu0 0.0
    %259 = vmatpush1.msra.mxu0 0.0
    %260 = vmatprep.subr.mxu0 0.0
    %261 = vmatpush1.msra.mxu0 0.0
    %262 = vmatprep.subr.mxu0 0.0
    %263 = vmatpush1.msra.mxu0 0.0
    %264 = vmatprep.subr.mxu0 0.0
    %265 = vmatpush1.msra.mxu0 0.0
    %266 = vmatprep.subr.mxu0 0.0
    %267 = vmatpush1.msra.mxu0 0.0
    %268 = vmatprep.subr.mxu0 0.0
    %269 = vmatpush1.msra.mxu0 0.0
    %270 = vmatprep.subr.mxu0 0.0
    %271 = vmatpush1.msra.mxu0 0.0
    %272 = vmatprep.subr.mxu0 0.0
    %273 = vmatpush1.msra.mxu0 0.0
    %274 = vmatprep.subr.mxu0 0.0
    %275 = vmatpush1.msra.mxu0 0.0
    %276 = vmatprep.subr.mxu0 0.0
    %277 = vmatpush1.msra.mxu0 0.0
    %278 = vmatprep.subr.mxu0 0.0
    %279 = vmatpush1.msra.mxu0 0.0
    %280 = vmatprep.subr.mxu0 0.0
    %281 = vmatpush1.msra.mxu0 0.0
    %282 = vmatprep.subr.mxu0 0.0
    %283 = vmatpush1.msra.mxu0 0.0
    %284 = vmatprep.subr.mxu0 0.0
    %285 = vmatpush1.msra.mxu0 0.0
    %286 = vmatprep.subr.mxu0 0.0
    %287 = vmatpush1.msra.mxu0 0.0
    %288 = vmatprep.subr.mxu0 0.0
    %289 = vmatpush1.msra.mxu0 0.0
    %290 = vmatprep.subr.mxu0 0.0
    %291 = vmatpush1.msra.mxu0 0.0
    %292 = vmatprep.subr.mxu0 0.0
    %293 = vmatpush1.msra.mxu0 0.0
    %294 = vmatprep.subr.mxu0 0.0
    %295 = vmatpush1.msra.mxu0 0.0
    %296 = vmatprep.subr.mxu0 0.0
    %297 = vmatpush1.msra.mxu0 0.0
    %298 = vmatprep.subr.mxu0 0.0
    %299 = vmatpush1.msra.mxu0 0.0
    %300 = vmatprep.subr.mxu0 0.0
    %301 = vmatpush1.msra.mxu0 0.0
    %302 = vmatprep.subr.mxu0 0.0
    %303 = vmatpush1.msra.mxu0 0.0
    %304 = vmatprep.subr.mxu0 0.0
    %305 = vmatpush1.msra.mxu0 0.0
    %306 = vmatprep.subr.mxu0 0.0
    %307 = vmatpush1.msra.mxu0 0.0
    %308 = vmatprep.subr.mxu0 0.0
    %309 = vmatpush1.msra.mxu0 0.0
    %310 = vmatprep.subr.mxu0 0.0
    %311 = vmatpush1.msra.mxu0 0.0
    %312 = vmatprep.subr.mxu0 0.0
    %313 = vmatpush1.msra.mxu0 0.0
    %314 = vmatprep.subr.mxu0 0.0
    %315 = vmatpush1.msra.mxu0 0.0
    %316 = vmatprep.subr.mxu0 0.0
    %317 = vmatpush1.msra.mxu0 0.0
    %318 = vmatprep.mubr.f32.mxu0 0.0
    %319 = vmatmul.mubr.f32.gmra.mrb[0].mxu0 %v252
    %v320 = vpop.f32.mrb[0].mxu0
    %v321 = vadd.f32 0.0, %v320
    %v322 = vpop.f32.mrb[0].mxu0
    %323 = vdwg.mxu0
    %v324 = vadd.f32 %v250, %v321
    %v325 = vtanh.pop %v324
    %v326 = vmul.f32 %v325, %v145
    %v327 = vsel %vm62, %v326, 0.0
    %328 = vadd.xlane.f32.xlu0 %v327
    %v329 = vpop.xlane.xlu0 %328
    %vm330 = vcmp.eq.s32.totalorder %v46, 2
    %v331 = vsel %vm330, 1, 0
    %vm332 = vcmp.eq.s32.totalorder %v331, 1
    %v333 = vsel %vm332, %v329, 0.0
    %v334 = vadd.f32 %v244, %v333
    %335 = vset.pattern.permute.xlu0 3
    %336 = vperm.xlu0 %335, %v44
    %v337 = vpop.permute.xlu0 %336
    %v339 = vmul.f32 %v337, %v55
    %v340 = vadd.f32 %v339, %v60
    %v342 = vsel %vm62, %v325, 0
    %344 = vmatprep.subr.mxu0 0.0
    %345 = vmatpush1.msra.mxu0 %v41
    %346 = vmatprep.subr.mxu0 0.0
    %347 = vmatpush1.msra.mxu0 %v68
    %348 = vmatprep.subr.mxu0 0.0
    %349 = vmatpush1.msra.mxu0 0.0
    %350 = vmatprep.subr.mxu0 0.0
    %351 = vmatpush1.msra.mxu0 0.0
    %352 = vmatprep.subr.mxu0 0.0
    %353 = vmatpush1.msra.mxu0 0.0
    %354 = vmatprep.subr.mxu0 0.0
    %355 = vmatpush1.msra.mxu0 0.0
    %356 = vmatprep.subr.mxu0 0.0
    %357 = vmatpush1.msra.mxu0 0.0
    %358 = vmatprep.subr.mxu0 0.0
    %359 = vmatpush1.msra.mxu0 0.0
    %360 = vmatprep.subr.mxu0 0.0
    %361 = vmatpush1.msra.mxu0 0.0
    %362 = vmatprep.subr.mxu0 0.0
    %363 = vmatpush1.msra.mxu0 0.0
    %364 = vmatprep.subr.mxu0 0.0
    %365 = vmatpush1.msra.mxu0 0.0
    %366 = vmatprep.subr.mxu0 0.0
    %367 = vmatpush1.msra.mxu0 0.0
    %368 = vmatprep.subr.mxu0 0.0
    %369 = vmatpush1.msra.mxu0 0.0
    %370 = vmatprep.subr.mxu0 0.0
    %371 = vmatpush1.msra.mxu0 0.0
    %372 = vmatprep.subr.mxu0 0.0
    %373 = vmatpush1.msra.mxu0 0.0
    %374 = vmatprep.subr.mxu0 0.0
    %375 = vmatpush1.msra.mxu0 0.0
    %376 = vmatprep.subr.mxu0 0.0
    %377 = vmatpush1.msra.mxu0 0.0
    %378 = vmatprep.subr.mxu0 0.0
    %379 = vmatpush1.msra.mxu0 0.0
    %380 = vmatprep.subr.mxu0 0.0
    %381 = vmatpush1.msra.mxu0 0.0
    %382 = vmatprep.subr.mxu0 0.0
    %383 = vmatpush1.msra.mxu0 0.0
    %384 = vmatprep.subr.mxu0 0.0
    %385 = vmatpush1.msra.mxu0 0.0
    %386 = vmatprep.subr.mxu0 0.0
    %387 = vmatpush1.msra.mxu0 0.0
    %388 = vmatprep.subr.mxu0 0.0
    %389 = vmatpush1.msra.mxu0 0.0
    %390 = vmatprep.subr.mxu0 0.0
    %391 = vmatpush1.msra.mxu0 0.0
    %392 = vmatprep.subr.mxu0 0.0
    %393 = vmatpush1.msra.mxu0 0.0
    %394 = vmatprep.subr.mxu0 0.0
    %395 = vmatpush1.msra.mxu0 0.0
    %396 = vmatprep.subr.mxu0 0.0
    %397 = vmatpush1.msra.mxu0 0.0
    %398 = vmatprep.subr.mxu0 0.0
    %399 = vmatpush1.msra.mxu0 0.0
    %400 = vmatprep.subr.mxu0 0.0
    %401 = vmatpush1.msra.mxu0 0.0
    %402 = vmatprep.subr.mxu0 0.0
    %403 = vmatpush1.msra.mxu0 0.0
    %404 = vmatprep.subr.mxu0 0.0
    %405 = vmatpush1.msra.mxu0 0.0
    %406 = vmatprep.subr.mxu0 0.0
    %407 = vmatpush1.msra.mxu0 0.0
    %408 = vmatprep.mubr.f32.mxu0 0.0
    %409 = vmatmul.mubr.f32.gmra.mrb[0].mxu0 %v342
    %v410 = vpop.f32.mrb[0].mxu0
    %v411 = vadd.f32 0.0, %v410
    %v412 = vpop.f32.mrb[0].mxu0
    %413 = vdwg.mxu0
    %v414 = vadd.f32 %v340, %v411
    %v415 = vtanh.pop %v414
    %v416 = vmul.f32 %v415, %v145
    %v417 = vsel %vm62, %v416, 0.0
    %418 = vadd.xlane.f32.xlu0 %v417
    %v419 = vpop.xlane.xlu0 %418
    %vm420 = vcmp.eq.s32.totalorder %v46, 3
    %v421 = vsel %vm420, 1, 0
    %vm422 = vcmp.eq.s32.totalorder %v421, 1
    %v423 = vsel %vm422, %v419, 0.0
    %v424 = vadd.f32 %v334, %v423
    %425 = vset.pattern.permute.xlu0 4
    %426 = vperm.xlu0 %425, %v44
    %v427 = vpop.permute.xlu0 %426
    %v429 = vmul.f32 %v427, %v55
    %v430 = vadd.f32 %v429, %v60
    %v432 = vsel %vm62, %v415, 0
    %434 = vmatprep.subr.mxu0 0.0
    %435 = vmatpush1.msra.mxu0 %v41
    %436 = vmatprep.subr.mxu0 0.0
    %437 = vmatpush1.msra.mxu0 %v68
    %438 = vmatprep.subr.mxu0 0.0
    %439 = vmatpush1.msra.mxu0 0.0
    %440 = vmatprep.subr.mxu0 0.0
    %441 = vmatpush1.msra.mxu0 0.0
    %442 = vmatprep.subr.mxu0 0.0
    %443 = vmatpush1.msra.mxu0 0.0
    %444 = vmatprep.subr.mxu0 0.0
    %445 = vmatpush1.msra.mxu0 0.0
    %446 = vmatprep.subr.mxu0 0.0
    %447 = vmatpush1.msra.mxu0 0.0
    %448 = vmatprep.subr.mxu0 0.0
    %449 = vmatpush1.msra.mxu0 0.0
    %450 = vmatprep.subr.mxu0 0.0
    %451 = vmatpush1.msra.mxu0 0.0
    %452 = vmatprep.subr.mxu0 0.0
    %453 = vmatpush1.msra.mxu0 0.0
    %454 = vmatprep.subr.mxu0 0.0
    %455 = vmatpush1.msra.mxu0 0.0
    %456 = vmatprep.subr.mxu0 0.0
    %457 = vmatpush1.msra.mxu0 0.0
    %458 = vmatprep.subr.mxu0 0.0
    %459 = vmatpush1.msra.mxu0 0.0
    %460 = vmatprep.subr.mxu0 0.0
    %461 = vmatpush1.msra.mxu0 0.0
    %462 = vmatprep.subr.mxu0 0.0
    %463 = vmatpush1.msra.mxu0 0.0
    %464 = vmatprep.subr.mxu0 0.0
    %465 = vmatpush1.msra.mxu0 0.0
    %466 = vmatprep.subr.mxu0 0.0
    %467 = vmatpush1.msra.mxu0 0.0
    %468 = vmatprep.subr.mxu0 0.0
    %469 = vmatpush1.msra.mxu0 0.0
    %470 = vmatprep.subr.mxu0 0.0
    %471 = vmatpush1.msra.mxu0 0.0
    %472 = vmatprep.subr.mxu0 0.0
    %473 = vmatpush1.msra.mxu0 0.0
    %474 = vmatprep.subr.mxu0 0.0
    %475 = vmatpush1.msra.mxu0 0.0
    %476 = vmatprep.subr.mxu0 0.0
    %477 = vmatpush1.msra.mxu0 0.0
    %478 = vmatprep.subr.mxu0 0.0
    %479 = vmatpush1.msra.mxu0 0.0
    %480 = vmatprep.subr.mxu0 0.0
    %481 = vmatpush1.msra.mxu0 0.0
    %482 = vmatprep.subr.mxu0 0.0
    %483 = vmatpush1.msra.mxu0 0.0
    %484 = vmatprep.subr.mxu0 0.0
    %485 = vmatpush1.msra.mxu0 0.0
    %486 = vmatprep.subr.mxu0 0.0
    %487 = vmatpush1.msra.mxu0 0.0
    %488 = vmatprep.subr.mxu0 0.0
    %489 = vmatpush1.msra.mxu0 0.0
    %490 = vmatprep.subr.mxu0 0.0
    %491 = vmatpush1.msra.mxu0 0.0
    %492 = vmatprep.subr.mxu0 0.0
    %493 = vmatpush1.msra.mxu0 0.0
    %494 = vmatprep.subr.mxu0 0.0
    %495 = vmatpush1.msra.mxu0 0.0
    %496 = vmatprep.subr.mxu0 0.0
    %497 = vmatpush1.msra.mxu0 0.0
    %498 = vmatprep.mubr.f32.mxu0 0.0
    %499 = vmatmul.mubr.f32.gmra.mrb[0].mxu0 %v432
    %v500 = vpop.f32.mrb[0].mxu0
    %v501 = vadd.f32 0.0, %v500
    %v502 = vpop.f32.mrb[0].mxu0
    %503 = vdwg.mxu0
    %v504 = vadd.f32 %v430, %v501
    %v505 = vtanh.pop %v504
    %v506 = vmul.f32 %v505, %v145
    %v507 = vsel %vm62, %v506, 0.0
    %508 = vadd.xlane.f32.xlu0 %v507
    %v509 = vpop.xlane.xlu0 %508
    %vm510 = vcmp.eq.s32.totalorder %v46, 4
    %v511 = vsel %vm510, 1, 0
    %vm512 = vcmp.eq.s32.totalorder %v511, 1
    %v513 = vsel %vm512, %v509, 0.0
    %v514 = vadd.f32 %v424, %v513
    %515 = vset.pattern.permute.xlu0 5
    %516 = vperm.xlu0 %515, %v44
    %v517 = vpop.permute.xlu0 %516
    %v519 = vmul.f32 %v517, %v55
    %v520 = vadd.f32 %v519, %v60
    %v522 = vsel %vm62, %v505, 0
    %524 = vmatprep.subr.mxu0 0.0
    %525 = vmatpush1.msra.mxu0 %v41
    %526 = vmatprep.subr.mxu0 0.0
    %527 = vmatpush1.msra.mxu0 %v68
    %528 = vmatprep.subr.mxu0 0.0
    %529 = vmatpush1.msra.mxu0 0.0
    %530 = vmatprep.subr.mxu0 0.0
    %531 = vmatpush1.msra.mxu0 0.0
    %532 = vmatprep.subr.mxu0 0.0
    %533 = vmatpush1.msra.mxu0 0.0
    %534 = vmatprep.subr.mxu0 0.0
    %535 = vmatpush1.msra.mxu0 0.0
    %536 = vmatprep.subr.mxu0 0.0
    %537 = vmatpush1.msra.mxu0 0.0
    %538 = vmatprep.subr.mxu0 0.0
    %539 = vmatpush1.msra.mxu0 0.0
    %540 = vmatprep.subr.mxu0 0.0
    %541 = vmatpush1.msra.mxu0 0.0
    %542 = vmatprep.subr.mxu0 0.0
    %543 = vmatpush1.msra.mxu0 0.0
    %544 = vmatprep.subr.mxu0 0.0
    %545 = vmatpush1.msra.mxu0 0.0
    %546 = vmatprep.subr.mxu0 0.0
    %547 = vmatpush1.msra.mxu0 0.0
    %548 = vmatprep.subr.mxu0 0.0
    %549 = vmatpush1.msra.mxu0 0.0
    %550 = vmatprep.subr.mxu0 0.0
    %551 = vmatpush1.msra.mxu0 0.0
    %552 = vmatprep.subr.mxu0 0.0
    %553 = vmatpush1.msra.mxu0 0.0
    %554 = vmatprep.subr.mxu0 0.0
    %555 = vmatpush1.msra.mxu0 0.0
    %556 = vmatprep.subr.mxu0 0.0
    %557 = vmatpush1.msra.mxu0 0.0
    %558 = vmatprep.subr.mxu0 0.0
    %559 = vmatpush1.msra.mxu0 0.0
    %560 = vmatprep.subr.mxu0 0.0
    %561 = vmatpush1.msra.mxu0 0.0
    %562 = vmatprep.subr.mxu0 0.0
    %563 = vmatpush1.msra.mxu0 0.0
    %564 = vmatprep.subr.mxu0 0.0
    %565 = vmatpush1.msra.mxu0 0.0
    %566 = vmatprep.subr.mxu0 0.0
    %567 = vmatpush1.msra.mxu0 0.0
    %568 = vmatprep.subr.mxu0 0.0
    %569 = vmatpush1.msra.mxu0 0.0
    %570 = vmatprep.subr.mxu0 0.0
    %571 = vmatpush1.msra.mxu0 0.0
    %572 = vmatprep.subr.mxu0 0.0
    %573 = vmatpush1.msra.mxu0 0.0
    %574 = vmatprep.subr.mxu0 0.0
    %575 = vmatpush1.msra.mxu0 0.0
    %576 = vmatprep.subr.mxu0 0.0
    %577 = vmatpush1.msra.mxu0 0.0
    %578 = vmatprep.subr.mxu0 0.0
    %579 = vmatpush1.msra.mxu0 0.0
    %580 = vmatprep.subr.mxu0 0.0
    %581 = vmatpush1.msra.mxu0 0.0
    %582 = vmatprep.subr.mxu0 0.0
    %583 = vmatpush1.msra.mxu0 0.0
    %584 = vmatprep.subr.mxu0 0.0
    %585 = vmatpush1.msra.mxu0 0.0
    %586 = vmatprep.subr.mxu0 0.0
    %587 = vmatpush1.msra.mxu0 0.0
    %588 = vmatprep.mubr.f32.mxu0 0.0
    %589 = vmatmul.mubr.f32.gmra.mrb[0].mxu0 %v522
    %v590 = vpop.f32.mrb[0].mxu0
    %v591 = vadd.f32 0.0, %v590
    %v592 = vpop.f32.mrb[0].mxu0
    %593 = vdwg.mxu0
    %v594 = vadd.f32 %v520, %v591
    %v595 = vtanh.pop %v594
    %v596 = vmul.f32 %v595, %v145
    %v597 = vsel %vm62, %v596, 0.0
    %598 = vadd.xlane.f32.xlu0 %v597
    %v599 = vpop.xlane.xlu0 %598
    %vm600 = vcmp.eq.s32.totalorder %v46, 5
    %v601 = vsel %vm600, 1, 0
    %vm602 = vcmp.eq.s32.totalorder %v601, 1
    %v603 = vsel %vm602, %v599, 0.0
    %v604 = vadd.f32 %v514, %v603
    %605 = vset.pattern.permute.xlu0 6
    %606 = vperm.xlu0 %605, %v44
    %v607 = vpop.permute.xlu0 %606
    %v609 = vmul.f32 %v607, %v55
    %v610 = vadd.f32 %v609, %v60
    %v612 = vsel %vm62, %v595, 0
    %614 = vmatprep.subr.mxu0 0.0
    %615 = vmatpush1.msra.mxu0 %v41
    %616 = vmatprep.subr.mxu0 0.0
    %617 = vmatpush1.msra.mxu0 %v68
    %618 = vmatprep.subr.mxu0 0.0
    %619 = vmatpush1.msra.mxu0 0.0
    %620 = vmatprep.subr.mxu0 0.0
    %621 = vmatpush1.msra.mxu0 0.0
    %622 = vmatprep.subr.mxu0 0.0
    %623 = vmatpush1.msra.mxu0 0.0
    %624 = vmatprep.subr.mxu0 0.0
    %625 = vmatpush1.msra.mxu0 0.0
    %626 = vmatprep.subr.mxu0 0.0
    %627 = vmatpush1.msra.mxu0 0.0
    %628 = vmatprep.subr.mxu0 0.0
    %629 = vmatpush1.msra.mxu0 0.0
    %630 = vmatprep.subr.mxu0 0.0
    %631 = vmatpush1.msra.mxu0 0.0
    %632 = vmatprep.subr.mxu0 0.0
    %633 = vmatpush1.msra.mxu0 0.0
    %634 = vmatprep.subr.mxu0 0.0
    %635 = vmatpush1.msra.mxu0 0.0
    %636 = vmatprep.subr.mxu0 0.0
    %637 = vmatpush1.msra.mxu0 0.0
    %638 = vmatprep.subr.mxu0 0.0
    %639 = vmatpush1.msra.mxu0 0.0
    %640 = vmatprep.subr.mxu0 0.0
    %641 = vmatpush1.msra.mxu0 0.0
    %642 = vmatprep.subr.mxu0 0.0
    %643 = vmatpush1.msra.mxu0 0.0
    %644 = vmatprep.subr.mxu0 0.0
    %645 = vmatpush1.msra.mxu0 0.0
    %646 = vmatprep.subr.mxu0 0.0
    %647 = vmatpush1.msra.mxu0 0.0
    %648 = vmatprep.subr.mxu0 0.0
    %649 = vmatpush1.msra.mxu0 0.0
    %650 = vmatprep.subr.mxu0 0.0
    %651 = vmatpush1.msra.mxu0 0.0
    %652 = vmatprep.subr.mxu0 0.0
    %653 = vmatpush1.msra.mxu0 0.0
    %654 = vmatprep.subr.mxu0 0.0
    %655 = vmatpush1.msra.mxu0 0.0
    %656 = vmatprep.subr.mxu0 0.0
    %657 = vmatpush1.msra.mxu0 0.0
    %658 = vmatprep.subr.mxu0 0.0
    %659 = vmatpush1.msra.mxu0 0.0
    %660 = vmatprep.subr.mxu0 0.0
    %661 = vmatpush1.msra.mxu0 0.0
    %662 = vmatprep.subr.mxu0 0.0
    %663 = vmatpush1.msra.mxu0 0.0
    %664 = vmatprep.subr.mxu0 0.0
    %665 = vmatpush1.msra.mxu0 0.0
    %666 = vmatprep.subr.mxu0 0.0
    %667 = vmatpush1.msra.mxu0 0.0
    %668 = vmatprep.subr.mxu0 0.0
    %669 = vmatpush1.msra.mxu0 0.0
    %670 = vmatprep.subr.mxu0 0.0
    %671 = vmatpush1.msra.mxu0 0.0
    %672 = vmatprep.subr.mxu0 0.0
    %673 = vmatpush1.msra.mxu0 0.0
    %674 = vmatprep.subr.mxu0 0.0
    %675 = vmatpush1.msra.mxu0 0.0
    %676 = vmatprep.subr.mxu0 0.0
    %677 = vmatpush1.msra.mxu0 0.0
    %678 = vmatprep.mubr.f32.mxu0 0.0
    %679 = vmatmul.mubr.f32.gmra.mrb[0].mxu0 %v612
    %v680 = vpop.f32.mrb[0].mxu0
    %v681 = vadd.f32 0.0, %v680
    %v682 = vpop.f32.mrb[0].mxu0
    %683 = vdwg.mxu0
    %v684 = vadd.f32 %v610, %v681
    %v685 = vtanh.pop %v684
    %v686 = vmul.f32 %v685, %v145
    %v687 = vsel %vm62, %v686, 0.0
    %688 = vadd.xlane.f32.xlu0 %v687
    %v689 = vpop.xlane.xlu0 %688
    %vm690 = vcmp.eq.s32.totalorder %v46, 6
    %v691 = vsel %vm690, 1, 0
    %vm692 = vcmp.eq.s32.totalorder %v691, 1
    %v693 = vsel %vm692, %v689, 0.0
    %v694 = vadd.f32 %v604, %v693
    %695 = vset.pattern.permute.xlu0 7
    %696 = vperm.xlu0 %695, %v44
    %v697 = vpop.permute.xlu0 %696
    %v699 = vmul.f32 %v697, %v55
    %v700 = vadd.f32 %v699, %v60
    %v702 = vsel %vm62, %v685, 0
    %704 = vmatprep.subr.mxu0 0.0
    %705 = vmatpush1.msra.mxu0 %v41
    %706 = vmatprep.subr.mxu0 0.0
    %707 = vmatpush1.msra.mxu0 %v68
    %708 = vmatprep.subr.mxu0 0.0
    %709 = vmatpush1.msra.mxu0 0.0
    %710 = vmatprep.subr.mxu0 0.0
    %711 = vmatpush1.msra.mxu0 0.0
    %712 = vmatprep.subr.mxu0 0.0
    %713 = vmatpush1.msra.mxu0 0.0
    %714 = vmatprep.subr.mxu0 0.0
    %715 = vmatpush1.msra.mxu0 0.0
    %716 = vmatprep.subr.mxu0 0.0
    %717 = vmatpush1.msra.mxu0 0.0
    %718 = vmatprep.subr.mxu0 0.0
    %719 = vmatpush1.msra.mxu0 0.0
    %720 = vmatprep.subr.mxu0 0.0
    %721 = vmatpush1.msra.mxu0 0.0
    %722 = vmatprep.subr.mxu0 0.0
    %723 = vmatpush1.msra.mxu0 0.0
    %724 = vmatprep.subr.mxu0 0.0
    %725 = vmatpush1.msra.mxu0 0.0
    %726 = vmatprep.subr.mxu0 0.0
    %727 = vmatpush1.msra.mxu0 0.0
    %728 = vmatprep.subr.mxu0 0.0
    %729 = vmatpush1.msra.mxu0 0.0
    %730 = vmatprep.subr.mxu0 0.0
    %731 = vmatpush1.msra.mxu0 0.0
    %732 = vmatprep.subr.mxu0 0.0
    %733 = vmatpush1.msra.mxu0 0.0
    %734 = vmatprep.subr.mxu0 0.0
    %735 = vmatpush1.msra.mxu0 0.0
    %736 = vmatprep.subr.mxu0 0.0
    %737 = vmatpush1.msra.mxu0 0.0
    %738 = vmatprep.subr.mxu0 0.0
    %739 = vmatpush1.msra.mxu0 0.0
    %740 = vmatprep.subr.mxu0 0.0
    %741 = vmatpush1.msra.mxu0 0.0
    %742 = vmatprep.subr.mxu0 0.0
    %743 = vmatpush1.msra.mxu0 0.0
    %744 = vmatprep.subr.mxu0 0.0
    %745 = vmatpush1.msra.mxu0 0.0
    %746 = vmatprep.subr.mxu0 0.0
    %747 = vmatpush1.msra.mxu0 0.0
    %748 = vmatprep.subr.mxu0 0.0
    %749 = vmatpush1.msra.mxu0 0.0
    %750 = vmatprep.subr.mxu0 0.0
    %751 = vmatpush1.msra.mxu0 0.0
    %752 = vmatprep.subr.mxu0 0.0
    %753 = vmatpush1.msra.mxu0 0.0
    %754 = vmatprep.subr.mxu0 0.0
    %755 = vmatpush1.msra.mxu0 0.0
    %756 = vmatprep.subr.mxu0 0.0
    %757 = vmatpush1.msra.mxu0 0.0
    %758 = vmatprep.subr.mxu0 0.0
    %759 = vmatpush1.msra.mxu0 0.0
    %760 = vmatprep.subr.mxu0 0.0
    %761 = vmatpush1.msra.mxu0 0.0
    %762 = vmatprep.subr.mxu0 0.0
    %763 = vmatpush1.msra.mxu0 0.0
    %764 = vmatprep.subr.mxu0 0.0
    %765 = vmatpush1.msra.mxu0 0.0
    %766 = vmatprep.subr.mxu0 0.0
    %767 = vmatpush1.msra.mxu0 0.0
    %768 = vmatprep.mubr.f32.mxu0 0.0
    %769 = vmatmul.mubr.f32.gmra.mrb[0].mxu0 %v702
    %v770 = vpop.f32.mrb[0].mxu0
    %v771 = vadd.f32 0.0, %v770
    %v772 = vpop.f32.mrb[0].mxu0
    %773 = vdwg.mxu0
    %v774 = vadd.f32 %v700, %v771
    %v775 = vtanh.pop %v774
    %v776 = vmul.f32 %v775, %v145
    %v777 = vsel %vm62, %v776, 0.0
    %778 = vadd.xlane.f32.xlu0 %v777
    %v779 = vpop.xlane.xlu0 %778
    %vm780 = vcmp.eq.s32.totalorder %v46, 7
    %v781 = vsel %vm780, 1, 0
    %vm782 = vcmp.eq.s32.totalorder %v781, 1
    %v783 = vsel %vm782, %v779, 0.0
    %v784 = vadd.f32 %v694, %v783
    %785 = vset.pattern.permute.xlu0 8
    %786 = vperm.xlu0 %785, %v44
    %v787 = vpop.permute.xlu0 %786
    %v789 = vmul.f32 %v787, %v55
    %v790 = vadd.f32 %v789, %v60
    %v792 = vsel %vm62, %v775, 0
    %794 = vmatprep.subr.mxu0 0.0
    %795 = vmatpush1.msra.mxu0 %v41
    %796 = vmatprep.subr.mxu0 0.0
    %797 = vmatpush1.msra.mxu0 %v68
    %798 = vmatprep.subr.mxu0 0.0
    %799 = vmatpush1.msra.mxu0 0.0
    %800 = vmatprep.subr.mxu0 0.0
    %801 = vmatpush1.msra.mxu0 0.0
    %802 = vmatprep.subr.mxu0 0.0
    %803 = vmatpush1.msra.mxu0 0.0
    %804 = vmatprep.subr.mxu0 0.0
    %805 = vmatpush1.msra.mxu0 0.0
    %806 = vmatprep.subr.mxu0 0.0
    %807 = vmatpush1.msra.mxu0 0.0
    %808 = vmatprep.subr.mxu0 0.0
    %809 = vmatpush1.msra.mxu0 0.0
    %810 = vmatprep.subr.mxu0 0.0
    %811 = vmatpush1.msra.mxu0 0.0
    %812 = vmatprep.subr.mxu0 0.0
    %813 = vmatpush1.msra.mxu0 0.0
    %814 = vmatprep.subr.mxu0 0.0
    %815 = vmatpush1.msra.mxu0 0.0
    %816 = vmatprep.subr.mxu0 0.0
    %817 = vmatpush1.msra.mxu0 0.0
    %818 = vmatprep.subr.mxu0 0.0
    %819 = vmatpush1.msra.mxu0 0.0
    %820 = vmatprep.subr.mxu0 0.0
    %821 = vmatpush1.msra.mxu0 0.0
    %822 = vmatprep.subr.mxu0 0.0
    %823 = vmatpush1.msra.mxu0 0.0
    %824 = vmatprep.subr.mxu0 0.0
    %825 = vmatpush1.msra.mxu0 0.0
    %826 = vmatprep.subr.mxu0 0.0
    %827 = vmatpush1.msra.mxu0 0.0
    %828 = vmatprep.subr.mxu0 0.0
    %829 = vmatpush1.msra.mxu0 0.0
    %830 = vmatprep.subr.mxu0 0.0
    %831 = vmatpush1.msra.mxu0 0.0
    %832 = vmatprep.subr.mxu0 0.0
    %833 = vmatpush1.msra.mxu0 0.0
    %834 = vmatprep.subr.mxu0 0.0
    %835 = vmatpush1.msra.mxu0 0.0
    %836 = vmatprep.subr.mxu0 0.0
    %837 = vmatpush1.msra.mxu0 0.0
    %838 = vmatprep.subr.mxu0 0.0
    %839 = vmatpush1.msra.mxu0 0.0
    %840 = vmatprep.subr.mxu0 0.0
    %841 = vmatpush1.msra.mxu0 0.0
    %842 = vmatprep.subr.mxu0 0.0
    %843 = vmatpush1.msra.mxu0 0.0
    %844 = vmatprep.subr.mxu0 0.0
    %845 = vmatpush1.msra.mxu0 0.0
    %846 = vmatprep.subr.mxu0 0.0
    %847 = vmatpush1.msra.mxu0 0.0
    %848 = vmatprep.subr.mxu0 0.0
    %849 = vmatpush1.msra.mxu0 0.0
    %850 = vmatprep.subr.mxu0 0.0
    %851 = vmatpush1.msra.mxu0 0.0
    %852 = vmatprep.subr.mxu0 0.0
    %853 = vmatpush1.msra.mxu0 0.0
    %854 = vmatprep.subr.mxu0 0.0
    %855 = vmatpush1.msra.mxu0 0.0
    %856 = vmatprep.subr.mxu0 0.0
    %857 = vmatpush1.msra.mxu0 0.0
    %858 = vmatprep.mubr.f32.mxu0 0.0
    %859 = vmatmul.mubr.f32.gmra.mrb[0].mxu0 %v792
    %v860 = vpop.f32.mrb[0].mxu0
    %v861 = vadd.f32 0.0, %v860
    %v862 = vpop.f32.mrb[0].mxu0
    %863 = vdwg.mxu0
    %v864 = vadd.f32 %v790, %v861
    %v865 = vtanh.pop %v864
    %v866 = vmul.f32 %v865, %v145
    %v867 = vsel %vm62, %v866, 0.0
    %868 = vadd.xlane.f32.xlu0 %v867
    %v869 = vpop.xlane.xlu0 %868
    %vm870 = vcmp.eq.s32.totalorder %v46, 8
    %v871 = vsel %vm870, 1, 0
    %vm872 = vcmp.eq.s32.totalorder %v871, 1
    %v873 = vsel %vm872, %v869, 0.0
    %v874 = vadd.f32 %v784, %v873
    %875 = vset.pattern.permute.xlu0 9
    %876 = vperm.xlu0 %875, %v44
    %v877 = vpop.permute.xlu0 %876
    %v879 = vmul.f32 %v877, %v55
    %v880 = vadd.f32 %v879, %v60
    %v882 = vsel %vm62, %v865, 0
    %884 = vmatprep.subr.mxu0 0.0
    %885 = vmatpush1.msra.mxu0 %v41
    %886 = vmatprep.subr.mxu0 0.0
    %887 = vmatpush1.msra.mxu0 %v68
    %888 = vmatprep.subr.mxu0 0.0
    %889 = vmatpush1.msra.mxu0 0.0
    %890 = vmatprep.subr.mxu0 0.0
    %891 = vmatpush1.msra.mxu0 0.0
    %892 = vmatprep.subr.mxu0 0.0
    %893 = vmatpush1.msra.mxu0 0.0
    %894 = vmatprep.subr.mxu0 0.0
    %895 = vmatpush1.msra.mxu0 0.0
    %896 = vmatprep.subr.mxu0 0.0
    %897 = vmatpush1.msra.mxu0 0.0
    %898 = vmatprep.subr.mxu0 0.0
    %899 = vmatpush1.msra.mxu0 0.0
    %900 = vmatprep.subr.mxu0 0.0
    %901 = vmatpush1.msra.mxu0 0.0
    %902 = vmatprep.subr.mxu0 0.0
    %903 = vmatpush1.msra.mxu0 0.0
    %904 = vmatprep.subr.mxu0 0.0
    %905 = vmatpush1.msra.mxu0 0.0
    %906 = vmatprep.subr.mxu0 0.0
    %907 = vmatpush1.msra.mxu0 0.0
    %908 = vmatprep.subr.mxu0 0.0
    %909 = vmatpush1.msra.mxu0 0.0
    %910 = vmatprep.subr.mxu0 0.0
    %911 = vmatpush1.msra.mxu0 0.0
    %912 = vmatprep.subr.mxu0 0.0
    %913 = vmatpush1.msra.mxu0 0.0
    %914 = vmatprep.subr.mxu0 0.0
    %915 = vmatpush1.msra.mxu0 0.0
    %916 = vmatprep.subr.mxu0 0.0
    %917 = vmatpush1.msra.mxu0 0.0
    %918 = vmatprep.subr.mxu0 0.0
    %919 = vmatpush1.msra.mxu0 0.0
    %920 = vmatprep.subr.mxu0 0.0
    %921 = vmatpush1.msra.mxu0 0.0
    %922 = vmatprep.subr.mxu0 0.0
    %923 = vmatpush1.msra.mxu0 0.0
    %924 = vmatprep.subr.mxu0 0.0
    %925 = vmatpush1.msra.mxu0 0.0
    %926 = vmatprep.subr.mxu0 0.0
    %927 = vmatpush1.msra.mxu0 0.0
    %928 = vmatprep.subr.mxu0 0.0
    %929 = vmatpush1.msra.mxu0 0.0
    %930 = vmatprep.subr.mxu0 0.0
    %931 = vmatpush1.msra.mxu0 0.0
    %932 = vmatprep.subr.mxu0 0.0
    %933 = vmatpush1.msra.mxu0 0.0
    %934 = vmatprep.subr.mxu0 0.0
    %935 = vmatpush1.msra.mxu0 0.0
    %936 = vmatprep.subr.mxu0 0.0
    %937 = vmatpush1.msra.mxu0 0.0
    %938 = vmatprep.subr.mxu0 0.0
    %939 = vmatpush1.msra.mxu0 0.0
    %940 = vmatprep.subr.mxu0 0.0
    %941 = vmatpush1.msra.mxu0 0.0
    %942 = vmatprep.subr.mxu0 0.0
    %943 = vmatpush1.msra.mxu0 0.0
    %944 = vmatprep.subr.mxu0 0.0
    %945 = vmatpush1.msra.mxu0 0.0
    %946 = vmatprep.subr.mxu0 0.0
    %947 = vmatpush1.msra.mxu0 0.0
    %948 = vmatprep.mubr.f32.mxu0 0.0
    %949 = vmatmul.mubr.f32.gmra.mrb[0].mxu0 %v882
    %v950 = vpop.f32.mrb[0].mxu0
    %v951 = vadd.f32 0.0, %v950
    %v952 = vpop.f32.mrb[0].mxu0
    %953 = vdwg.mxu0
    %v954 = vadd.f32 %v880, %v951
    %v955 = vtanh.pop %v954
    %v956 = vmul.f32 %v955, %v145
    %v957 = vsel %vm62, %v956, 0.0
    %958 = vadd.xlane.f32.xlu0 %v957
    %v959 = vpop.xlane.xlu0 %958
    %vm960 = vcmp.eq.s32.totalorder %v46, 9
    %v961 = vsel %vm960, 1, 0
    %vm962 = vcmp.eq.s32.totalorder %v961, 1
    %v963 = vsel %vm962, %v959, 0.0
    %v964 = vadd.f32 %v874, %v963
    %v966 = vrot.slane %v43, 3
    %s967 = vtos %v966
    %v968 = vstv %s967
    %v970 = vadd.f32 %v964, %v968
    %971 = vst.msk [vmem:[#allocation7] sm:$0xff] %vm62, %v970
    // Predicated region
    $region22: #{tpu_custom_call.1} parent=1 // pred_check
      _
    $region23: #{tpu_custom_call.1} parent=1 // pred_check_branch
      %973 = sbr.rel (0) target = $region25
    $region24: #{tpu_custom_call.1} parent=1 // pred_region
      %s975 = ssub.s32 128, 128
      %976 = vsyncadd [#allocation4], %s975
      %s978 = sshll.u32 [#allocation7], 4
      %s979 = int_to_ptr.vmem [resolvable:$true] %s978
      %981 = dma.vmem_to_hbm [thread:$0]  %s979, 128, %s3, [#allocation4]
    $region25: #{tpu_custom_call.1} parent=1 // pred_fallthru
      _
    // Predicated region
    $region26: #{tpu_custom_call.1} parent=1 // pred_check
      _
    $region27: #{tpu_custom_call.1} parent=1 // pred_check_branch
      %983 = sbr.rel (0) target = $region29
    $region28: #{tpu_custom_call.1} parent=1 // pred_region
      %984 = dma.done [#allocation4], 128
    $region29: #{tpu_custom_call.1} parent=1 // pred_fallthru
      _
    %985 = vsyncpa [#allocation3], 1
    %986 = vsyncpa [#allocation6], 1
    %987 = vsyncpa [#allocation4], 1

</llo_original>
